<compile_context>
chip_gen: v7x
topology: tpu7x:2x2x1
jax: 0.10.0
libtpu: 0.0.40
codegen_flags: <defaults>
</compile_context>

<pallas_src>
import functools

import jax
import jax.numpy as jnp
from jax.experimental import pallas as pl
from jax.experimental.pallas import tpu as pltpu


_VMEM_LIMIT = 32 * 1024 * 1024     # safe budget on v5e (16 MiB default), v6e, v7x (64 MiB phys)
_NEG_BIG = -3.0e38                 # bf16-representable "-inf" for maxpool padding


def _round_up(x, m):
    return (x + m - 1) // m * m


# ----------------------------------------------------------------------------
# Pallas kernels
# ----------------------------------------------------------------------------
def _mm_kernel(x_ref, w_ref, *rest, relu, has_res, multi_k):
    """Fused (X @ W) [+ residual] [ReLU].  Grid = (M, N, K); f32 accumulation."""
    if has_res:
        r_ref, o_ref = rest[0], rest[1]
        acc_ref = rest[2] if multi_k else None
    else:
        r_ref = None
        o_ref = rest[0]
        acc_ref = rest[1] if multi_k else None

    def epilogue(acc):
        y = acc
        if has_res:
            y = y + r_ref[...].astype(jnp.float32)
        if relu:
            y = jnp.maximum(y, 0.0)
        o_ref[...] = y.astype(o_ref.dtype)

    if multi_k:
        @pl.when(pl.program_id(2) == 0)
        def _():
            acc_ref[...] = jnp.zeros_like(acc_ref)

        acc_ref[...] += jnp.dot(x_ref[...], w_ref[...],
                                preferred_element_type=jnp.float32)

        @pl.when(pl.program_id(2) == pl.num_programs(2) - 1)
        def _():
            epilogue(acc_ref[...])
    else:
        epilogue(jnp.dot(x_ref[...], w_ref[...],
                         preferred_element_type=jnp.float32))


def _maxpool_kernel(x_ref, o_ref):
    # x_ref: (9, tm, C) window-stacked patches; reduce max over the window axis.
    o_ref[...] = jnp.max(x_ref[...], axis=0)


def _avgpool_kernel(x_ref, o_ref):
    # x_ref: (1, HW, C); global spatial mean done in f32.
    o_ref[...] = jnp.mean(x_ref[...].astype(jnp.float32), axis=1, keepdims=True)


# ----------------------------------------------------------------------------
# Pallas wrappers
# ----------------------------------------------------------------------------
def _pick_tiles(M, K, N):
    # tm: right-size to M (multiple of 8) so late layers (M = 32, 8) are not
    # padded 16x to 128; cap at 256 to keep >=2 parallel M blocks on big layers.
    tm = min(_round_up(M, 8), 256)
    Mp = _round_up(M, tm)
    m_blocks = Mp // tm

    # tn: as wide as possible while keeping the "parallel" grid product >= 2
    # (keeps both v7x TensorCores busy on the small-M late layers).
    Np = _round_up(N, 128)
    tn = None
    for cand in (512, 256, 128):
        if Np % cand == 0 and m_blocks * (Np // cand) >= 2:
            tn = cand
            break
    if tn is None:
        tn = min(Np, 128)

    # tk: full K in one step when it fits comfortably, otherwise the largest
    # 128-multiple that divides the padded K (layer4: K=4608 -> tk=512, 9 steps).
    Kp = _round_up(K, 128)
    if Kp <= 1024:
        tk = Kp
    else:
        tk = 128
        for cand in (512, 384, 256):
            if Kp % cand == 0:
                tk = cand
                break
    return tm, tn, tk, Mp, Np, Kp


def fused_matmul(x, w, residual=None, relu=False, out_dtype=jnp.bfloat16):
    """y = act(x @ w [+ residual]); x:(M,K) w:(K,N).

    Operands are fed to the MXU in bf16; accumulation and the epilogue stay f32.
    Any per-output-channel (BN) scale must already be folded into `w`.
    """
    M, K = x.shape
    N = w.shape[1]
    tm, tn, tk, Mp, Np, Kp = _pick_tiles(M, K, N)

    xp = jnp.pad(x.astype(jnp.bfloat16), ((0, Mp - M), (0, Kp - K)))
    wp = jnp.pad(w.astype(jnp.bfloat16), ((0, Kp - K), (0, Np - N)))

    has_res = residual is not None
    multi_k = (Kp // tk) > 1

    in_specs = [
        pl.BlockSpec((tm, tk), lambda i, j, k: (i, k)),
        pl.BlockSpec((tk, tn), lambda i, j, k: (k, j)),
    ]
    args = [xp, wp]
    if has_res:
        rp = jnp.pad(residual.astype(jnp.bfloat16), ((0, Mp - M), (0, Np - N)))
        in_specs.append(pl.BlockSpec((tm, tn), lambda i, j, k: (i, j)))
        args.append(rp)

    scratch = [pltpu.VMEM((tm, tn), jnp.float32)] if multi_k else []

    grid = (Mp // tm, Np // tn, Kp // tk)
    out = pl.pallas_call(
        functools.partial(_mm_kernel, relu=relu, has_res=has_res,
                          multi_k=multi_k),
        out_shape=jax.ShapeDtypeStruct((Mp, Np), out_dtype),
        grid_spec=pltpu.PrefetchScalarGridSpec(
            num_scalar_prefetch=0,
            grid=grid,
            in_specs=in_specs,
            out_specs=pl.BlockSpec((tm, tn), lambda i, j, k: (i, j)),
            scratch_shapes=scratch,
        ),
        compiler_params=pltpu.CompilerParams(
            dimension_semantics=("parallel", "parallel", "arbitrary"),
            vmem_limit_bytes=_VMEM_LIMIT),
    )(*args)
    return out[:M, :N]


def _im2col(x_nhwc, kh, kw, stride, pad, pad_value=0.0):
    n, h, w, c = x_nhwc.shape
    xp = jnp.pad(x_nhwc, ((0, 0), (pad, pad), (pad, pad), (0, 0)),
                 constant_values=pad_value)
    ho = (h + 2 * pad - kh) // stride + 1
    wo = (w + 2 * pad - kw) // stride + 1
    cols = []
    for i in range(kh):
        for j in range(kw):
            cols.append(xp[:, i:i + stride * ho:stride,
                            j:j + stride * wo:stride, :])
    patches = jnp.stack(cols, axis=-2)          # (n, ho, wo, kh*kw, c)
    return patches, (n, ho, wo)


def conv_bn(x_nhwc, w_oihw, scale, stride, pad, relu=False, residual_nhwc=None):
    """conv(bias-free) -> BN-increment scale (folded into W) -> (+res) -> (ReLU)."""
    cout, cin, kh, kw = w_oihw.shape
    # Fold the BN per-channel scale into the weights: (x @ w) * s == x @ (w * s).
    wcol = jnp.transpose(w_oihw, (2, 3, 1, 0)).reshape(kh * kw * cin, cout)
    wcol = wcol * scale[None, :]
    # TODO(synk): im2col still materializes kh*kw shifted copies of the
    # activation in HBM (now in bf16 and without any layout transposes); a true
    # implicit-GEMM (overlapping-window index_map over the NHWC tensor) would
    # remove that duplication entirely.
    patches, (n, ho, wo) = _im2col(x_nhwc.astype(jnp.bfloat16), kh, kw, stride, pad)
    xcol = patches.reshape(n * ho * wo, kh * kw * cin)
    res = None
    if residual_nhwc is not None:
        res = residual_nhwc.reshape(n * ho * wo, cout)
    y = fused_matmul(xcol, wcol, residual=res, relu=relu)
    return y.reshape(n, ho, wo, cout)


def maxpool_3x3_s2_p1(x_nhwc):
    n, h, w, c = x_nhwc.shape
    patches, (_, ho, wo) = _im2col(x_nhwc, 3, 3, 2, 1, pad_value=_NEG_BIG)
    M = n * ho * wo
    stacked = jnp.transpose(patches.reshape(M, 9, c), (1, 0, 2))   # (9, M, c)
    tm = min(_round_up(M, 8), 512)
    Mp = _round_up(M, tm)
    if Mp > M:
        stacked = jnp.pad(stacked, ((0, 0), (0, Mp - M), (0, 0)),
                          constant_values=_NEG_BIG)
    out = pl.pallas_call(
        _maxpool_kernel,
        out_shape=jax.ShapeDtypeStruct((Mp, c), x_nhwc.dtype),
        grid=(Mp // tm,),
        in_specs=[pl.BlockSpec((9, tm, c), lambda i: (0, i, 0))],
        out_specs=pl.BlockSpec((tm, c), lambda i: (i, 0)),
        compiler_params=pltpu.CompilerParams(
            dimension_semantics=("parallel",),
            vmem_limit_bytes=_VMEM_LIMIT),
    )(stacked)
    return out[:M].reshape(n, ho, wo, c)


def global_avgpool(x_nhwc):
    n, h, w, c = x_nhwc.shape
    x = x_nhwc.reshape(n, h * w, c)
    out = pl.pallas_call(
        _avgpool_kernel,
        out_shape=jax.ShapeDtypeStruct((n, 1, c), jnp.float32),
        grid=(n,),
        in_specs=[pl.BlockSpec((1, h * w, c), lambda i: (i, 0, 0))],
        out_specs=pl.BlockSpec((1, 1, c), lambda i: (i, 0, 0)),
        compiler_params=pltpu.CompilerParams(
            dimension_semantics=("parallel",),
            vmem_limit_bytes=_VMEM_LIMIT),
    )(x)
    return out.reshape(n, c)


# ----------------------------------------------------------------------------
# Model (parameters + forward glue)
# ----------------------------------------------------------------------------
def init_params(key):
    keys = iter(jax.random.split(key, 256))

    def conv_w(cout, cin, kh, kw):
        return (jax.random.normal(next(keys), (cout, cin, kh, kw), jnp.float32)
                * 0.05)

    def bn_scale(c):
        gamma = jax.random.uniform(next(keys), (c,), jnp.float32, 0.5, 1.5)
        var = jax.random.uniform(next(keys), (c,), jnp.float32, 0.5, 1.5)
        return gamma / jnp.sqrt(var + 1e-5)     # increment-mode BN = pure scale

    p = {"conv1_w": conv_w(64, 3, 7, 7), "bn1_s": bn_scale(64)}

    def make_block(sz, downsample):
        sz_in = sz // 2 if downsample else sz
        blk = {
            "w1": conv_w(sz, sz_in, 3, 3), "s1": bn_scale(sz),
            "w2": conv_w(sz, sz, 3, 3), "s2": bn_scale(sz),
            "downsample": downsample,
        }
        if downsample:
            blk["wd"] = conv_w(sz, sz_in, 1, 1)
            blk["sd"] = bn_scale(sz)
        return blk

    layer_cfg = [(64, 3, False), (128, 4, True), (256, 6, True), (512, 3, True)]
    layers = []
    for sz, n_blocks, first_ds in layer_cfg:
        blocks = []
        for b in range(n_blocks):
            blocks.append(make_block(sz, downsample=(first_ds and b == 0)))
        layers.append(blocks)
    p["layers"] = layers

    p["fc_w"] = jax.random.normal(next(keys), (1000, 512), jnp.float32) * 0.02
    # fc bias exists in the module but cancels on the increment path.
    p["fc_b"] = jnp.zeros((1000,), jnp.float32)
    return p


def basic_block(x_nhwc, blk):
    identity = x_nhwc
    stride = 2 if blk["downsample"] else 1
    out = conv_bn(x_nhwc, blk["w1"], blk["s1"], stride=stride, pad=1, relu=True)
    if blk["downsample"]:
        identity = conv_bn(x_nhwc, blk["wd"], blk["sd"], stride=2, pad=0,
                           relu=False)
    # conv2 -> bn2 -> +identity -> relu2 fused into one Pallas matmul epilogue.
    out = conv_bn(out, blk["w2"], blk["s2"], stride=1, pad=1, relu=True,
                  residual_nhwc=identity)
    return out


def resnet_incr_forward(params, x_incr):
    """x_incr: NCHW float32 increment tensor. Returns (logits_incr, None)."""
    x = jnp.transpose(x_incr, (0, 2, 3, 1))            # NCHW -> NHWC, once at I/O
    out = conv_bn(x, params["conv1_w"], params["bn1_s"],
                  stride=2, pad=3, relu=True)          # conv1 + bn1 + relu
    out = maxpool_3x3_s2_p1(out)
    for blocks in params["layers"]:
        for blk in blocks:
            out = basic_block(out, blk)
    pooled = global_avgpool(out)                       # (N, 512), f32
    logits = fused_matmul(pooled, params["fc_w"].T, residual=None,
                          relu=False, out_dtype=jnp.float32)   # bias cancels
    return logits, None


# ----------------------------------------------------------------------------
if __name__ == "__main__":
    key = jax.random.PRNGKey(0)
    pkey, xkey = jax.random.split(key)
    params = init_params(pkey)

    # Small input consistent with the module: NCHW, 3 input channels.
    x = jax.random.normal(xkey, (2, 3, 64, 64), jnp.float32)

    logits, _ = resnet_incr_forward(params, x)
    logits = jax.block_until_ready(logits)

    assert logits.shape == (2, 1000), logits.shape
    assert jnp.all(jnp.isfinite(logits))
    print("KERNEL_OK")
</pallas_src>

<mosaic_0001>
module attributes {stable_mosaic.version = 11 : i64} {
  func.func @_mm_kernel(%arg0: i32, %arg1: i32, %arg2: i32, %arg3: memref<256x256xbf16, #tpu.memory_space<vmem>>, %arg4: memref<256x128xbf16, #tpu.memory_space<vmem>>, %arg5: memref<256x128xbf16, #tpu.memory_space<vmem>>) attributes {dimension_semantics = [#tpu.dimension_semantics<parallel>, #tpu.dimension_semantics<parallel>, #tpu.dimension_semantics<arbitrary>], iteration_bounds = array<i64: 8, 1, 1>, scalar_prefetch = 0 : i64, scratch_operands = 0 : i64, tpu.core_type = #tpu.core_type<tc>, window_params = [{transform_indices = @transform_0, window_bounds = array<i64: 256, 256>}, {transform_indices = @transform_1, window_bounds = array<i64: 256, 128>}, {transform_indices = @transform_2, window_bounds = array<i64: 256, 128>}]} {
    %c0 = arith.constant 0 : index
    %c0_0 = arith.constant 0 : index
    %0 = vector.load %arg3[%c0, %c0_0] : memref<256x256xbf16, #tpu.memory_space<vmem>>, vector<256x256xbf16>
    %c0_1 = arith.constant 0 : index
    %c0_2 = arith.constant 0 : index
    %1 = vector.load %arg4[%c0_1, %c0_2] : memref<256x128xbf16, #tpu.memory_space<vmem>>, vector<256x128xbf16>
    %cst = arith.constant dense<0.000000e+00> : vector<256x128xf32>
    %2 = tpu.matmul %0, %1, %cst {dimension_numbers = #tpu.dot_dimension_numbers<[1], [0], [0], [1], [0, 0, 1, 1], [], []>} : vector<256x256xbf16>, vector<256x128xbf16>, vector<256x128xf32> -> vector<256x128xf32>
    %cst_3 = arith.constant 0.000000e+00 : f32
    %3 = vector.broadcast %cst_3 : f32 to vector<256x128xf32>
    %4 = arith.maximumf %2, %3 : vector<256x128xf32>
    %5 = arith.truncf %4 : vector<256x128xf32> to vector<256x128xbf16>
    %c0_4 = arith.constant 0 : index
    %c0_5 = arith.constant 0 : index
    %6 = vector.load %arg5[%c0_4, %c0_5] : memref<256x128xbf16, #tpu.memory_space<vmem>>, vector<256x128xbf16>
    tpu.vector_store %arg5[%c0_4, %c0_5], %5 {strides = array<i32>} : memref<256x128xbf16, #tpu.memory_space<vmem>>, vector<256x128xbf16>,
    return
  }
  func.func @transform_0(%arg0: i32, %arg1: i32, %arg2: i32) -> (i32, i32) {
    %c0_i32 = arith.constant 0 : i32
    return %arg0, %arg2 : i32, i32
  }
  func.func @transform_1(%arg0: i32, %arg1: i32, %arg2: i32) -> (i32, i32) {
    %c0_i32 = arith.constant 0 : i32
    return %arg2, %arg1 : i32, i32
  }
  func.func @transform_2(%arg0: i32, %arg1: i32, %arg2: i32) -> (i32, i32) {
    %c0_i32 = arith.constant 0 : i32
    return %arg0, %arg1 : i32, i32
  }
}

</mosaic_0001>

<llo_original>
// kernel: tpu_custom_call.1
$region0: #{tpu_custom_call.1}
  #allocation0 [shape = 'u32[]', space=smem, size = 0x4, offset = 0x4, fixed_abs, tag = 'smem constant byte address 0x4 - core index']
  #allocation1 [shape = 'u32[144,128]{1,0:T(1,128)}', space=vmem, size = 0x12000, scoped, tag = 'internal scratch']
  %s0 = inlined_call_operand.hbm [shape: bf16[2048,256], index: 0, kind: input, shape index: {}]
  %s1 = inlined_call_operand.hbm [shape: bf16[256,128], index: 1, kind: input, shape index: {}]
  %s2 = inlined_call_operand.hbm [shape: bf16[2048,128], index: 2, kind: output, shape index: {}]
  %s3 = sld [smem:[#allocation0]]
  $region49: #{tpu_custom_call.1} parent=0
    _
  %s5 = ssub.s32 1, %s3
  %s6 = scalar_select 0, %s5, %s3
  $region1: #{tpu_custom_call.1} parent=0
    #allocation2 [shape = 'u8[262144]{0}', space=vmem, size = 0x40000, scoped, tag = 'input window, operand 0']
    #allocation3 [shape = 's32[2]{0}', space=sflag, size = 0x8, scoped, tag = 'scoped memory for tpu_custom_call.1']
    #allocation4 [shape = 's32[2]{0}', space=sflag, size = 0x8, scoped, tag = 'scoped memory for tpu_custom_call.1']
    #allocation5 [shape = 'u8[65536]{0}', space=vmem, size = 0x10000, scoped, tag = 'input window, operand 1, single buffered']
    #allocation6 [shape = 's32[1]{0}', space=sflag, size = 0x4, scoped, tag = 'scoped memory for tpu_custom_call.1']
    #allocation7 [shape = 'u8[131072]{0}', space=vmem, size = 0x20000, scoped, tag = 'output window, operand 0']
    %7 = vsyncpa [#allocation3], 0
    %s8 = scalar_lea.sflag [#allocation3], 1
    %9 = vsyncpa %s8, 0
    %10 = vsyncpa [#allocation6], 0
    %11 = vsyncpa [#allocation4], 0
    %s12 = scalar_lea.sflag [#allocation4], 1
    %13 = vsyncpa %s12, 0
    loop: start=0, step=1, limit=10
    $region2: #{tpu_custom_call.1} parent=1 // loop_pre_header
      _
    $region3: #{tpu_custom_call.1} parent=1 // loop_header
      %s15 = sphi 0, %s19
      %p16 = scmp.ge.s32.totalorder %s15, 10
      %s22 = sphi 0, %s41
      %s23 = sphi 0, %s37
      %s24 = sphi 0, %s33
      %s25 = sphi 0, %s22
      %s26 = sphi 0, %s23
      %s27 = sphi 0, %s24
      %s28 = sphi 0, %s25
      %s29 = sphi 0, %s26
      %s30 = sphi 0, %s27
      %s46 = sphi 0, %s48
      %s49 = sphi 0, %s46
      %s50 = sphi 0, %s49
      %s66 = sphi 0, %s50
      %s74 = sphi 0, %s76
      %s77 = sphi 0, %s74
      %s78 = sphi 0, %s77
      %s94 = sphi 0, %s78
      %s102 = sphi 0, %s104
      %s105 = sphi 0, %s102
      %s106 = sphi 0, %s105
      %s122 = sphi 0, %s106
    $region4: #{tpu_custom_call.1} parent=1 // loop_header_branch
      %18 = sbr.rel (%p16) target = $region8
    $region5: #{tpu_custom_call.1} parent=1 // loop_body
      %s20 = ssub.s32 %s15, 1
      %s21 = ssub.s32 %s15, 2
      %s31 = sadd.s32 1, %s24
      %p32 = scmp.ge.s32.totalorder %s31, 1
      %s33 = scalar_select %p32, 0, %s31
      %s34 = sadd.s32 1, %s23
      %s35 = scalar_select %p32, %s34, %s23
      %p36 = scmp.ge.s32.totalorder %s35, 1
      %s37 = scalar_select %p36, 0, %s35
      %s38 = sadd.s32 1, %s22
      %s39 = scalar_select %p36, %s38, %s22
      %p40 = scmp.ge.s32.totalorder %s39, 8
      %s41 = scalar_select %p40, 0, %s39
      %s42 = ssub.s32 %s22, %s41
      %s43 = ssub.s32 %s24, %s33
      %s44 = sor.u32 %s42, %s43
      %p45 = scmp.eq.s32.totalorder %s44, 0
      %s47 = sadd.s32 %s46, 1
      %s48 = scalar_select %p45, %s46, %s47
      %p51 = pneg %p45
      %p52 = scmp.eq.s32.totalorder %s15, 7
      %p53 = por %p51, %p52
      %p54 = scmp.ne.s32.totalorder %s46, %s49
      %p55 = scmp.eq.s32.totalorder %s15, 0
      %p56 = por %p54, %p55
      %p57 = scmp.ne.s32.totalorder %s46, %s49
      %p58 = scmp.eq.s32.totalorder %s20, 7
      %p59 = por %p57, %p58
      %p60 = scmp.ne.s32.totalorder %s49, %s50
      %p61 = scmp.eq.s32.totalorder %s20, 0
      %p62 = por %p60, %p61
      %p63 = scmp.ne.s32.totalorder %s49, %s50
      %p64 = scmp.eq.s32.totalorder %s21, 7
      %p65 = por %p63, %p64
      %p67 = scmp.ne.s32.totalorder %s50, %s66
      %p68 = scmp.eq.s32.totalorder %s21, 0
      %p69 = por %p67, %p68
      %s70 = ssub.s32 %s24, %s33
      %s71 = ssub.s32 %s23, %s37
      %s72 = sor.u32 %s70, %s71
      %p73 = scmp.eq.s32.totalorder %s72, 0
      %s75 = sadd.s32 %s74, 1
      %s76 = scalar_select %p73, %s74, %s75
      %p79 = pneg %p73
      %p80 = scmp.eq.s32.totalorder %s15, 7
      %p81 = por %p79, %p80
      %p82 = scmp.ne.s32.totalorder %s74, %s77
      %p83 = scmp.eq.s32.totalorder %s15, 0
      %p84 = por %p82, %p83
      %p85 = scmp.ne.s32.totalorder %s74, %s77
      %p86 = scmp.eq.s32.totalorder %s20, 7
      %p87 = por %p85, %p86
      %p88 = scmp.ne.s32.totalorder %s77, %s78
      %p89 = scmp.eq.s32.totalorder %s20, 0
      %p90 = por %p88, %p89
      %p91 = scmp.ne.s32.totalorder %s77, %s78
      %p92 = scmp.eq.s32.totalorder %s21, 7
      %p93 = por %p91, %p92
      %p95 = scmp.ne.s32.totalorder %s78, %s94
      %p96 = scmp.eq.s32.totalorder %s21, 0
      %p97 = por %p95, %p96
      %s98 = ssub.s32 %s22, %s41
      %s99 = ssub.s32 %s23, %s37
      %s100 = sor.u32 %s98, %s99
      %p101 = scmp.eq.s32.totalorder %s100, 0
      %s103 = sadd.s32 %s102, 1
      %s104 = scalar_select %p101, %s102, %s103
      %p107 = pneg %p101
      %p108 = scmp.eq.s32.totalorder %s15, 7
      %p109 = por %p107, %p108
      %p110 = scmp.ne.s32.totalorder %s102, %s105
      %p111 = scmp.eq.s32.totalorder %s15, 0
      %p112 = por %p110, %p111
      %p113 = scmp.ne.s32.totalorder %s102, %s105
      %p114 = scmp.eq.s32.totalorder %s20, 7
      %p115 = por %p113, %p114
      %p116 = scmp.ne.s32.totalorder %s105, %s106
      %p117 = scmp.eq.s32.totalorder %s20, 0
      %p118 = por %p116, %p117
      %p119 = scmp.ne.s32.totalorder %s105, %s106
      %p120 = scmp.eq.s32.totalorder %s21, 7
      %p121 = por %p119, %p120
      %p123 = scmp.ne.s32.totalorder %s106, %s122
      %p124 = scmp.eq.s32.totalorder %s21, 0
      %p125 = por %p123, %p124
      %p126 = scmp.le.s32.totalorder 1, %s15
      %p127 = scmp.lt.s32.totalorder %s15, 9
      %p128 = pnand %p126, %p127
      %p129 = pneg %p128
      // Predicated region
      $region9: #{tpu_custom_call.1} parent=5 // pred_check
        _
      $region10: #{tpu_custom_call.1} parent=5 // pred_check_branch
        %131 = sbr.rel (%p128) target = $region12
      $region11: #{tpu_custom_call.1} parent=5 // pred_region
        %s132 = ssub.s32 %s15, 1
        // Predicated region
        $region13: #{tpu_custom_call.1} parent=11 // pred_check
          %p133 = pneg %p90
        $region14: #{tpu_custom_call.1} parent=11 // pred_check_branch
          %135 = sbr.rel (%p133) target = $region16
        $region15: #{tpu_custom_call.1} parent=11 // pred_region
          %s136 = smul.u32 32, %s27
          %s138 = ssub.s32 2048, 2048
          %139 = vsyncadd [#allocation6], %s138
          %s140 = sadd.s32 %s26, %s136
          %s141 = smul.addr %s140, 64
          %s142 = scalar_lea.hbm %s1, %s141
          %s143 = sshll.u32 [#allocation5], 4
          %s144 = int_to_ptr.vmem [resolvable:$true] %s143
          %149 = dma.hbm_to_vmem [thread:$0]  %s142, 2048, %s144, [#allocation6], 64, 64, 4
        $region16: #{tpu_custom_call.1} parent=11 // pred_fallthru
          _
      $region12: #{tpu_custom_call.1} parent=5 // pred_fallthru
        _
      %p150 = scmp.lt.s32.totalorder %s15, 8
      // Predicated region
      $region17: #{tpu_custom_call.1} parent=5 // pred_check
        %p151 = pneg %p150
      $region18: #{tpu_custom_call.1} parent=5 // pred_check_branch
        %153 = sbr.rel (%p151) target = $region20
      $region19: #{tpu_custom_call.1} parent=5 // pred_region
        // Predicated region
        $region21: #{tpu_custom_call.1} parent=19 // pred_check
          %p154 = pneg %p56
        $region22: #{tpu_custom_call.1} parent=19 // pred_check_branch
          %156 = sbr.rel (%p154) target = $region24
        $region23: #{tpu_custom_call.1} parent=19 // pred_region
          %s157 = sand.u32 %s46, 1
          %s158 = scalar_lea.sflag [#allocation3], %s157
          %s159 = sand.u32 %s46, 1
          %s160 = smul.addr %s159, 256
          %s161 = scalar_lea.vmem [#allocation2], %s160
          %s162 = smul.u32 32, %s22
          %s163 = smul.u32 2, %s24
          %s165 = ssub.s32 4096, 4096
          %166 = vsyncadd %s158, %s165
          %s167 = smul.addr %s162, 2
          %s168 = sadd.s32 %s163, %s167
          %s169 = smul.addr %s168, 64
          %s170 = scalar_lea.hbm %s0, %s169
          %s171 = sshll.u32 %s161, 4
          %s172 = int_to_ptr.vmem [resolvable:$true] %s171
          %177 = dma.hbm_to_vmem [thread:$0]  %s170, 4096, %s172, %s158, 128, 128, 8
        $region24: #{tpu_custom_call.1} parent=19 // pred_fallthru
          _
      $region20: #{tpu_custom_call.1} parent=5 // pred_fallthru
        _
      %p178 = scmp.le.s32.totalorder 1, %s15
      %p179 = scmp.lt.s32.totalorder %s15, 9
      %p180 = pnand %p178, %p179
      %p181 = pneg %p180
      // Predicated region
      $region25: #{tpu_custom_call.1} parent=5 // pred_check
        _
      $region26: #{tpu_custom_call.1} parent=5 // pred_check_branch
        %183 = sbr.rel (%p180) target = $region28
      $region27: #{tpu_custom_call.1} parent=5 // pred_region
        %s184 = ssub.s32 %s15, 1
        %s185 = sand.u32 %s49, 1
        %s186 = scalar_lea.sflag [#allocation3], %s185
        %s187 = sand.u32 %s49, 1
        %s188 = smul.addr %s187, 256
        %s189 = scalar_lea.vmem [#allocation2], %s188
        // Predicated region
        $region29: #{tpu_custom_call.1} parent=27 // pred_check
          %p190 = pneg %p62
        $region30: #{tpu_custom_call.1} parent=27 // pred_check_branch
          %192 = sbr.rel (%p190) target = $region32
        $region31: #{tpu_custom_call.1} parent=27 // pred_region
          %193 = dma.done %s186, 4096
        $region32: #{tpu_custom_call.1} parent=27 // pred_fallthru
          _
        // Predicated region
        $region33: #{tpu_custom_call.1} parent=27 // pred_check
          %p194 = pneg %p90
        $region34: #{tpu_custom_call.1} parent=27 // pred_check_branch
          %196 = sbr.rel (%p194) target = $region36
        $region35: #{tpu_custom_call.1} parent=27 // pred_region
          %197 = dma.done [#allocation6], 2048
        $region36: #{tpu_custom_call.1} parent=27 // pred_fallthru
          _
        %s198 = sand.u32 %s49, 1
        %s199 = scalar_lea.sflag [#allocation3], %s198
        %s200 = sand.u32 %s49, 1
        %s201 = smul.addr %s200, 256
        %s202 = scalar_lea.vmem [#allocation2], %s201
        %p203 = pneg %p62
        %p204 = pneg %p59
        %p205 = pneg %p90
        %p206 = pneg %p87
        %p207 = pneg %p118
        %p208 = pneg %p115
        %s209 = sand.u32 %s105, 1
        %s210 = scalar_lea.sflag [#allocation4], %s209
        %s211 = sand.u32 %s105, 1
        %s212 = smul.addr %s211, 128
        %s213 = scalar_lea.vmem [#allocation7], %s212
        %s214 = smul.u32 32, %s25
        %s215 = smul.u32 2, %s27
        %s216 = smul.u32 32, %s27
        %s217 = smul.u32 32, %s25
        %v219 = vld [vmem:[%s189] sm:$0xff]
        %v220 = vld [vmem:[%s189 + $0x8] sm:$0xff]
        %v221 = vld [vmem:[%s189 + $0x10] sm:$0xff]
        %v222 = vld [vmem:[%s189 + $0x18] sm:$0xff]
        %v223 = vld [vmem:[%s189 + $0x20] sm:$0xff]
        %v224 = vld [vmem:[%s189 + $0x28] sm:$0xff]
        %v225 = vld [vmem:[%s189 + $0x30] sm:$0xff]
        %v226 = vld [vmem:[%s189 + $0x38] sm:$0xff]
        %v227 = vld [vmem:[%s189 + $0x40] sm:$0xff]
        %v228 = vld [vmem:[%s189 + $0x48] sm:$0xff]
        %v229 = vld [vmem:[%s189 + $0x50] sm:$0xff]
        %v230 = vld [vmem:[%s189 + $0x58] sm:$0xff]
        %v231 = vld [vmem:[%s189 + $0x60] sm:$0xff]
        %v232 = vld [vmem:[%s189 + $0x68] sm:$0xff]
        %v233 = vld [vmem:[%s189 + $0x70] sm:$0xff]
        %v234 = vld [vmem:[%s189 + $0x78] sm:$0xff]
        %v235 = vld [vmem:[%s189 + $0x80] sm:$0xff]
        %v236 = vld [vmem:[%s189 + $0x88] sm:$0xff]
        %v237 = vld [vmem:[%s189 + $0x90] sm:$0xff]
        %v238 = vld [vmem:[%s189 + $0x98] sm:$0xff]
        %v239 = vld [vmem:[%s189 + $0xa0] sm:$0xff]
        %v240 = vld [vmem:[%s189 + $0xa8] sm:$0xff]
        %v241 = vld [vmem:[%s189 + $0xb0] sm:$0xff]
        %v242 = vld [vmem:[%s189 + $0xb8] sm:$0xff]
        %v243 = vld [vmem:[%s189 + $0xc0] sm:$0xff]
        %v244 = vld [vmem:[%s189 + $0xc8] sm:$0xff]
        %v245 = vld [vmem:[%s189 + $0xd0] sm:$0xff]
        %v246 = vld [vmem:[%s189 + $0xd8] sm:$0xff]
        %v247 = vld [vmem:[%s189 + $0xe0] sm:$0xff]
        %v248 = vld [vmem:[%s189 + $0xe8] sm:$0xff]
        %v249 = vld [vmem:[%s189 + $0xf0] sm:$0xff]
        %v250 = vld [vmem:[%s189 + $0xf8] sm:$0xff]
        %v251 = vld [vmem:[#allocation5] sm:$0xf]
        %v252 = vld [vmem:[#allocation5 + $0x4] sm:$0xf]
        %v253 = vld [vmem:[#allocation5 + $0x8] sm:$0xf]
        %v254 = vld [vmem:[#allocation5 + $0xc] sm:$0xf]
        %v255 = vld [vmem:[#allocation5 + $0x10] sm:$0xf]
        %v256 = vld [vmem:[#allocation5 + $0x14] sm:$0xf]
        %v257 = vld [vmem:[#allocation5 + $0x18] sm:$0xf]
        %v258 = vld [vmem:[#allocation5 + $0x1c] sm:$0xf]
        %v259 = vld [vmem:[#allocation5 + $0x20] sm:$0xf]
        %v260 = vld [vmem:[#allocation5 + $0x24] sm:$0xf]
        %v261 = vld [vmem:[#allocation5 + $0x28] sm:$0xf]
        %v262 = vld [vmem:[#allocation5 + $0x2c] sm:$0xf]
        %v263 = vld [vmem:[#allocation5 + $0x30] sm:$0xf]
        %v264 = vld [vmem:[#allocation5 + $0x34] sm:$0xf]
        %v265 = vld [vmem:[#allocation5 + $0x38] sm:$0xf]
        %v266 = vld [vmem:[#allocation5 + $0x3c] sm:$0xf]
        %v267 = vld [vmem:[#allocation5 + $0x40] sm:$0xf]
        %v268 = vld [vmem:[#allocation5 + $0x44] sm:$0xf]
        %v269 = vld [vmem:[#allocation5 + $0x48] sm:$0xf]
        %v270 = vld [vmem:[#allocation5 + $0x4c] sm:$0xf]
        %v271 = vld [vmem:[#allocation5 + $0x50] sm:$0xf]
        %v272 = vld [vmem:[#allocation5 + $0x54] sm:$0xf]
        %v273 = vld [vmem:[#allocation5 + $0x58] sm:$0xf]
        %v274 = vld [vmem:[#allocation5 + $0x5c] sm:$0xf]
        %v275 = vld [vmem:[#allocation5 + $0x60] sm:$0xf]
        %v276 = vld [vmem:[#allocation5 + $0x64] sm:$0xf]
        %v277 = vld [vmem:[#allocation5 + $0x68] sm:$0xf]
        %v278 = vld [vmem:[#allocation5 + $0x6c] sm:$0xf]
        %v279 = vld [vmem:[#allocation5 + $0x70] sm:$0xf]
        %v280 = vld [vmem:[#allocation5 + $0x74] sm:$0xf]
        %v281 = vld [vmem:[#allocation5 + $0x78] sm:$0xf]
        %v282 = vld [vmem:[#allocation5 + $0x7c] sm:$0xf]
        %v315 = vunpack.c.l.b16 %v219
        %v316 = vunpack.c.h.b16 %v219
        %v317 = vunpack.c.l.b16 %v220
        %v318 = vunpack.c.h.b16 %v220
        %v319 = vunpack.c.l.b16 %v221
        %v320 = vunpack.c.h.b16 %v221
        %v321 = vunpack.c.l.b16 %v222
        %v322 = vunpack.c.h.b16 %v222
        %v323 = vunpack.c.l.b16 %v223
        %v324 = vunpack.c.h.b16 %v223
        %v325 = vunpack.c.l.b16 %v224
        %v326 = vunpack.c.h.b16 %v224
        %v327 = vunpack.c.l.b16 %v225
        %v328 = vunpack.c.h.b16 %v225
        %v329 = vunpack.c.l.b16 %v226
        %v330 = vunpack.c.h.b16 %v226
        %v331 = vunpack.c.l.b16 %v227
        %v332 = vunpack.c.h.b16 %v227
        %v333 = vunpack.c.l.b16 %v228
        %v334 = vunpack.c.h.b16 %v228
        %v335 = vunpack.c.l.b16 %v229
        %v336 = vunpack.c.h.b16 %v229
        %v337 = vunpack.c.l.b16 %v230
        %v338 = vunpack.c.h.b16 %v230
        %v339 = vunpack.c.l.b16 %v231
        %v340 = vunpack.c.h.b16 %v231
        %v341 = vunpack.c.l.b16 %v232
        %v342 = vunpack.c.h.b16 %v232
        %v343 = vunpack.c.l.b16 %v233
        %v344 = vunpack.c.h.b16 %v233
        %v345 = vunpack.c.l.b16 %v234
        %v346 = vunpack.c.h.b16 %v234
        %v347 = vunpack.c.l.b16 %v235
        %v348 = vunpack.c.h.b16 %v235
        %v349 = vunpack.c.l.b16 %v236
        %v350 = vunpack.c.h.b16 %v236
        %v351 = vunpack.c.l.b16 %v237
        %v352 = vunpack.c.h.b16 %v237
        %v353 = vunpack.c.l.b16 %v238
        %v354 = vunpack.c.h.b16 %v238
        %v355 = vunpack.c.l.b16 %v239
        %v356 = vunpack.c.h.b16 %v239
        %v357 = vunpack.c.l.b16 %v240
        %v358 = vunpack.c.h.b16 %v240
        %v359 = vunpack.c.l.b16 %v241
        %v360 = vunpack.c.h.b16 %v241
        %v361 = vunpack.c.l.b16 %v242
        %v362 = vunpack.c.h.b16 %v242
        %v363 = vunpack.c.l.b16 %v243
        %v364 = vunpack.c.h.b16 %v243
        %v365 = vunpack.c.l.b16 %v244
        %v366 = vunpack.c.h.b16 %v244
        %v367 = vunpack.c.l.b16 %v245
        %v368 = vunpack.c.h.b16 %v245
        %v369 = vunpack.c.l.b16 %v246
        %v370 = vunpack.c.h.b16 %v246
        %v371 = vunpack.c.l.b16 %v247
        %v372 = vunpack.c.h.b16 %v247
        %v373 = vunpack.c.l.b16 %v248
        %v374 = vunpack.c.h.b16 %v248
        %v375 = vunpack.c.l.b16 %v249
        %v376 = vunpack.c.h.b16 %v249
        %v377 = vunpack.c.l.b16 %v250
        %v378 = vunpack.c.h.b16 %v250
        %v379 = vpack.c.b16 %v317, %v315
        %v380 = vpack.c.b16 %v318, %v316
        %v381 = vpack.c.b16 %v321, %v319
        %v382 = vpack.c.b16 %v322, %v320
        %v383 = vpack.c.b16 %v325, %v323
        %v384 = vpack.c.b16 %v326, %v324
        %v385 = vpack.c.b16 %v329, %v327
        %v386 = vpack.c.b16 %v330, %v328
        %v387 = vpack.c.b16 %v333, %v331
        %v388 = vpack.c.b16 %v334, %v332
        %v389 = vpack.c.b16 %v337, %v335
        %v390 = vpack.c.b16 %v338, %v336
        %v391 = vpack.c.b16 %v341, %v339
        %v392 = vpack.c.b16 %v342, %v340
        %v393 = vpack.c.b16 %v345, %v343
        %v394 = vpack.c.b16 %v346, %v344
        %v395 = vpack.c.b16 %v349, %v347
        %v396 = vpack.c.b16 %v350, %v348
        %v397 = vpack.c.b16 %v353, %v351
        %v398 = vpack.c.b16 %v354, %v352
        %v399 = vpack.c.b16 %v357, %v355
        %v400 = vpack.c.b16 %v358, %v356
        %v401 = vpack.c.b16 %v361, %v359
        %v402 = vpack.c.b16 %v362, %v360
        %v403 = vpack.c.b16 %v365, %v363
        %v404 = vpack.c.b16 %v366, %v364
        %v405 = vpack.c.b16 %v369, %v367
        %v406 = vpack.c.b16 %v370, %v368
        %v407 = vpack.c.b16 %v373, %v371
        %v408 = vpack.c.b16 %v374, %v372
        %v409 = vpack.c.b16 %v377, %v375
        %v410 = vpack.c.b16 %v378, %v376
        %v475 = vunpack.c.l.b16 %v251
        %v476 = vunpack.c.l.b16 %v252
        %v477 = vunpack.c.l.b16 %v253
        %v478 = vunpack.c.l.b16 %v254
        %v479 = vunpack.c.l.b16 %v255
        %v480 = vunpack.c.l.b16 %v256
        %v481 = vunpack.c.l.b16 %v257
        %v482 = vunpack.c.l.b16 %v258
        %v483 = vunpack.c.l.b16 %v259
        %v484 = vunpack.c.l.b16 %v260
        %v485 = vunpack.c.l.b16 %v261
        %v486 = vunpack.c.l.b16 %v262
        %v487 = vunpack.c.l.b16 %v263
        %v488 = vunpack.c.l.b16 %v264
        %v489 = vunpack.c.l.b16 %v265
        %v490 = vunpack.c.l.b16 %v266
        %v491 = vunpack.c.l.b16 %v267
        %v492 = vunpack.c.l.b16 %v268
        %v493 = vunpack.c.l.b16 %v269
        %v494 = vunpack.c.l.b16 %v270
        %v495 = vunpack.c.l.b16 %v271
        %v496 = vunpack.c.l.b16 %v272
        %v497 = vunpack.c.l.b16 %v273
        %v498 = vunpack.c.l.b16 %v274
        %v499 = vunpack.c.l.b16 %v275
        %v500 = vunpack.c.l.b16 %v276
        %v501 = vunpack.c.l.b16 %v277
        %v502 = vunpack.c.l.b16 %v278
        %v503 = vunpack.c.l.b16 %v279
        %v504 = vunpack.c.l.b16 %v280
        %v505 = vunpack.c.l.b16 %v281
        %v506 = vunpack.c.l.b16 %v282
        %v507 = vpack.c.b16 %v476, %v475
        %v508 = vpack.c.b16 %v478, %v477
        %v509 = vpack.c.b16 %v480, %v479
        %v510 = vpack.c.b16 %v482, %v481
        %v511 = vpack.c.b16 %v484, %v483
        %v512 = vpack.c.b16 %v486, %v485
        %v513 = vpack.c.b16 %v488, %v487
        %v514 = vpack.c.b16 %v490, %v489
        %v515 = vpack.c.b16 %v492, %v491
        %v516 = vpack.c.b16 %v494, %v493
        %v517 = vpack.c.b16 %v496, %v495
        %v518 = vpack.c.b16 %v498, %v497
        %v519 = vpack.c.b16 %v500, %v499
        %v520 = vpack.c.b16 %v502, %v501
        %v521 = vpack.c.b16 %v504, %v503
        %v522 = vpack.c.b16 %v506, %v505
        %539 = vmatprep.subr.bf16.mxu0 0
        %540 = vmatpush1.bf16.msra.mxu0 %v507
        %541 = vmatprep.subr.bf16.mxu0 0
        %542 = vmatpush1.bf16.msra.mxu0 %v508
        %543 = vmatprep.subr.bf16.mxu0 0
        %544 = vmatpush1.bf16.msra.mxu0 %v509
        %545 = vmatprep.subr.bf16.mxu0 0
        %546 = vmatpush1.bf16.msra.mxu0 %v510
        %547 = vmatprep.subr.bf16.mxu0 0
        %548 = vmatpush1.bf16.msra.mxu0 %v511
        %549 = vmatprep.subr.bf16.mxu0 0
        %550 = vmatpush1.bf16.msra.mxu0 %v512
        %551 = vmatprep.subr.bf16.mxu0 0
        %552 = vmatpush1.bf16.msra.mxu0 %v513
        %553 = vmatprep.subr.bf16.mxu0 0
        %554 = vmatpush1.bf16.msra.mxu0 %v514
        %555 = vmatprep.subr.bf16.mxu0 0
        %556 = vmatpush1.bf16.msra.mxu0 %v515
        %557 = vmatprep.subr.bf16.mxu0 0
        %558 = vmatpush1.bf16.msra.mxu0 %v516
        %559 = vmatprep.subr.bf16.mxu0 0
        %560 = vmatpush1.bf16.msra.mxu0 %v517
        %561 = vmatprep.subr.bf16.mxu0 0
        %562 = vmatpush1.bf16.msra.mxu0 %v518
        %563 = vmatprep.subr.bf16.mxu0 0
        %564 = vmatpush1.bf16.msra.mxu0 %v519
        %565 = vmatprep.subr.bf16.mxu0 0
        %566 = vmatpush1.bf16.msra.mxu0 %v520
        %567 = vmatprep.subr.bf16.mxu0 0
        %568 = vmatpush1.bf16.msra.mxu0 %v521
        %569 = vmatprep.subr.bf16.mxu0 0
        %570 = vmatpush1.bf16.msra.mxu0 %v522
        %571 = vmatprep.mubr.bf16.mxu0 %v380
        %572 = vmatmul.mubr.bf16.gmra.mrb[0].mxu0 %v379
        %v573 = vpop.f32.mrb[0].mxu0
        %v574 = vadd.f32 0.0, %v573
        %v575 = vpop.f32.mrb[0].mxu0
        %v576 = vpop.f32.mrb[0].mxu0
        %v577 = vadd.f32 0.0, %v576
        %v578 = vpop.f32.mrb[0].mxu0
        %579 = vmatprep.mubr.bf16.mxu0 %v382
        %580 = vmatmul.mubr.bf16.gmra.mrb[0].mxu0 %v381
        %v581 = vpop.f32.mrb[0].mxu0
        %v582 = vadd.f32 0.0, %v581
        %v583 = vpop.f32.mrb[0].mxu0
        %v584 = vpop.f32.mrb[0].mxu0
        %v585 = vadd.f32 0.0, %v584
        %v586 = vpop.f32.mrb[0].mxu0
        %587 = vmatprep.mubr.bf16.mxu0 %v384
        %588 = vmatmul.mubr.bf16.gmra.mrb[0].mxu0 %v383
        %v589 = vpop.f32.mrb[0].mxu0
        %v590 = vadd.f32 0.0, %v589
        %v591 = vpop.f32.mrb[0].mxu0
        %v592 = vpop.f32.mrb[0].mxu0
        %v593 = vadd.f32 0.0, %v592
        %v594 = vpop.f32.mrb[0].mxu0
        %595 = vmatprep.mubr.bf16.mxu0 %v386
        %596 = vmatmul.mubr.bf16.gmra.mrb[0].mxu0 %v385
        %v597 = vpop.f32.mrb[0].mxu0
        %v598 = vadd.f32 0.0, %v597
        %v599 = vpop.f32.mrb[0].mxu0
        %v600 = vpop.f32.mrb[0].mxu0
        %v601 = vadd.f32 0.0, %v600
        %v602 = vpop.f32.mrb[0].mxu0
        %603 = vmatprep.mubr.bf16.mxu0 %v388
        %604 = vmatmul.mubr.bf16.gmra.mrb[0].mxu0 %v387
        %v605 = vpop.f32.mrb[0].mxu0
        %v606 = vadd.f32 0.0, %v605
        %v607 = vpop.f32.mrb[0].mxu0
        %v608 = vpop.f32.mrb[0].mxu0
        %v609 = vadd.f32 0.0, %v608
        %v610 = vpop.f32.mrb[0].mxu0
        %611 = vmatprep.mubr.bf16.mxu0 %v390
        %612 = vmatmul.mubr.bf16.gmra.mrb[0].mxu0 %v389
        %v613 = vpop.f32.mrb[0].mxu0
        %v614 = vadd.f32 0.0, %v613
        %v615 = vpop.f32.mrb[0].mxu0
        %v616 = vpop.f32.mrb[0].mxu0
        %v617 = vadd.f32 0.0, %v616
        %v618 = vpop.f32.mrb[0].mxu0
        %619 = vmatprep.mubr.bf16.mxu0 %v392
        %620 = vmatmul.mubr.bf16.gmra.mrb[0].mxu0 %v391
        %v621 = vpop.f32.mrb[0].mxu0
        %v622 = vadd.f32 0.0, %v621
        %v623 = vpop.f32.mrb[0].mxu0
        %v624 = vpop.f32.mrb[0].mxu0
        %v625 = vadd.f32 0.0, %v624
        %v626 = vpop.f32.mrb[0].mxu0
        %627 = vmatprep.mubr.bf16.mxu0 %v394
        %628 = vmatmul.mubr.bf16.gmra.mrb[0].mxu0 %v393
        %v629 = vpop.f32.mrb[0].mxu0
        %v630 = vadd.f32 0.0, %v629
        %v631 = vpop.f32.mrb[0].mxu0
        %v632 = vpop.f32.mrb[0].mxu0
        %v633 = vadd.f32 0.0, %v632
        %v634 = vpop.f32.mrb[0].mxu0
        %635 = vmatprep.mubr.bf16.mxu0 %v396
        %636 = vmatmul.mubr.bf16.gmra.mrb[0].mxu0 %v395
        %v637 = vpop.f32.mrb[0].mxu0
        %v638 = vadd.f32 0.0, %v637
        %v639 = vpop.f32.mrb[0].mxu0
        %v640 = vpop.f32.mrb[0].mxu0
        %v641 = vadd.f32 0.0, %v640
        %v642 = vpop.f32.mrb[0].mxu0
        %643 = vmatprep.mubr.bf16.mxu0 %v398
        %644 = vmatmul.mubr.bf16.gmra.mrb[0].mxu0 %v397
        %v645 = vpop.f32.mrb[0].mxu0
        %v646 = vadd.f32 0.0, %v645
        %v647 = vpop.f32.mrb[0].mxu0
        %v648 = vpop.f32.mrb[0].mxu0
        %v649 = vadd.f32 0.0, %v648
        %v650 = vpop.f32.mrb[0].mxu0
        %651 = vmatprep.mubr.bf16.mxu0 %v400
        %652 = vmatmul.mubr.bf16.gmra.mrb[0].mxu0 %v399
        %v653 = vpop.f32.mrb[0].mxu0
        %v654 = vadd.f32 0.0, %v653
        %v655 = vpop.f32.mrb[0].mxu0
        %v656 = vpop.f32.mrb[0].mxu0
        %v657 = vadd.f32 0.0, %v656
        %v658 = vpop.f32.mrb[0].mxu0
        %659 = vmatprep.mubr.bf16.mxu0 %v402
        %660 = vmatmul.mubr.bf16.gmra.mrb[0].mxu0 %v401
        %v661 = vpop.f32.mrb[0].mxu0
        %v662 = vadd.f32 0.0, %v661
        %v663 = vpop.f32.mrb[0].mxu0
        %v664 = vpop.f32.mrb[0].mxu0
        %v665 = vadd.f32 0.0, %v664
        %v666 = vpop.f32.mrb[0].mxu0
        %667 = vmatprep.mubr.bf16.mxu0 %v404
        %668 = vmatmul.mubr.bf16.gmra.mrb[0].mxu0 %v403
        %v669 = vpop.f32.mrb[0].mxu0
        %v670 = vadd.f32 0.0, %v669
        %v671 = vpop.f32.mrb[0].mxu0
        %v672 = vpop.f32.mrb[0].mxu0
        %v673 = vadd.f32 0.0, %v672
        %v674 = vpop.f32.mrb[0].mxu0
        %675 = vmatprep.mubr.bf16.mxu0 %v406
        %676 = vmatmul.mubr.bf16.gmra.mrb[0].mxu0 %v405
        %v677 = vpop.f32.mrb[0].mxu0
        %v678 = vadd.f32 0.0, %v677
        %v679 = vpop.f32.mrb[0].mxu0
        %v680 = vpop.f32.mrb[0].mxu0
        %v681 = vadd.f32 0.0, %v680
        %v682 = vpop.f32.mrb[0].mxu0
        %683 = vmatprep.mubr.bf16.mxu0 %v408
        %684 = vmatmul.mubr.bf16.gmra.mrb[0].mxu0 %v407
        %v685 = vpop.f32.mrb[0].mxu0
        %v686 = vadd.f32 0.0, %v685
        %v687 = vpop.f32.mrb[0].mxu0
        %v688 = vpop.f32.mrb[0].mxu0
        %v689 = vadd.f32 0.0, %v688
        %v690 = vpop.f32.mrb[0].mxu0
        %691 = vmatprep.mubr.bf16.mxu0 %v410
        %692 = vmatmul.mubr.bf16.gmra.mrb[0].mxu0 %v409
        %v693 = vpop.f32.mrb[0].mxu0
        %v694 = vadd.f32 0.0, %v693
        %v695 = vpop.f32.mrb[0].mxu0
        %v696 = vpop.f32.mrb[0].mxu0
        %v697 = vadd.f32 0.0, %v696
        %v698 = vpop.f32.mrb[0].mxu0
        %699 = vdwg.mxu0
        %v700 = vmax.f32 %v574, 0.0
        %v701 = vmax.f32 %v577, 0.0
        %v702 = vmax.f32 %v582, 0.0
        %v703 = vmax.f32 %v585, 0.0
        %v704 = vmax.f32 %v590, 0.0
        %v705 = vmax.f32 %v593, 0.0
        %v706 = vmax.f32 %v598, 0.0
        %v707 = vmax.f32 %v601, 0.0
        %v708 = vmax.f32 %v606, 0.0
        %v709 = vmax.f32 %v609, 0.0
        %v710 = vmax.f32 %v614, 0.0
        %v711 = vmax.f32 %v617, 0.0
        %v712 = vmax.f32 %v622, 0.0
        %v713 = vmax.f32 %v625, 0.0
        %v714 = vmax.f32 %v630, 0.0
        %v715 = vmax.f32 %v633, 0.0
        %v716 = vmax.f32 %v638, 0.0
        %v717 = vmax.f32 %v641, 0.0
        %v718 = vmax.f32 %v646, 0.0
        %v719 = vmax.f32 %v649, 0.0
        %v720 = vmax.f32 %v654, 0.0
        %v721 = vmax.f32 %v657, 0.0
        %v722 = vmax.f32 %v662, 0.0
        %v723 = vmax.f32 %v665, 0.0
        %v724 = vmax.f32 %v670, 0.0
        %v725 = vmax.f32 %v673, 0.0
        %v726 = vmax.f32 %v678, 0.0
        %v727 = vmax.f32 %v681, 0.0
        %v728 = vmax.f32 %v686, 0.0
        %v729 = vmax.f32 %v689, 0.0
        %v730 = vmax.f32 %v694, 0.0
        %v731 = vmax.f32 %v697, 0.0
        %v732 = vpack.c.bf16 %v701, %v700
        %v733 = vpack.c.bf16 %v703, %v702
        %v734 = vpack.c.bf16 %v705, %v704
        %v735 = vpack.c.bf16 %v707, %v706
        %v736 = vpack.c.bf16 %v709, %v708
        %v737 = vpack.c.bf16 %v711, %v710
        %v738 = vpack.c.bf16 %v713, %v712
        %v739 = vpack.c.bf16 %v715, %v714
        %v740 = vpack.c.bf16 %v717, %v716
        %v741 = vpack.c.bf16 %v719, %v718
        %v742 = vpack.c.bf16 %v721, %v720
        %v743 = vpack.c.bf16 %v723, %v722
        %v744 = vpack.c.bf16 %v725, %v724
        %v745 = vpack.c.bf16 %v727, %v726
        %v746 = vpack.c.bf16 %v729, %v728
        %v747 = vpack.c.bf16 %v731, %v730
        %v764 = vunpack.c.l.b16 %v732
        %v765 = vunpack.c.h.b16 %v732
        %v766 = vunpack.c.l.b16 %v733
        %v767 = vunpack.c.h.b16 %v733
        %v768 = vunpack.c.l.b16 %v734
        %v769 = vunpack.c.h.b16 %v734
        %v770 = vunpack.c.l.b16 %v735
        %v771 = vunpack.c.h.b16 %v735
        %v772 = vunpack.c.l.b16 %v736
        %v773 = vunpack.c.h.b16 %v736
        %v774 = vunpack.c.l.b16 %v737
        %v775 = vunpack.c.h.b16 %v737
        %v776 = vunpack.c.l.b16 %v738
        %v777 = vunpack.c.h.b16 %v738
        %v778 = vunpack.c.l.b16 %v739
        %v779 = vunpack.c.h.b16 %v739
        %v780 = vunpack.c.l.b16 %v740
        %v781 = vunpack.c.h.b16 %v740
        %v782 = vunpack.c.l.b16 %v741
        %v783 = vunpack.c.h.b16 %v741
        %v784 = vunpack.c.l.b16 %v742
        %v785 = vunpack.c.h.b16 %v742
        %v786 = vunpack.c.l.b16 %v743
        %v787 = vunpack.c.h.b16 %v743
        %v788 = vunpack.c.l.b16 %v744
        %v789 = vunpack.c.h.b16 %v744
        %v790 = vunpack.c.l.b16 %v745
        %v791 = vunpack.c.h.b16 %v745
        %v792 = vunpack.c.l.b16 %v746
        %v793 = vunpack.c.h.b16 %v746
        %v794 = vunpack.c.l.b16 %v747
        %v795 = vunpack.c.h.b16 %v747
        %v796 = vpack.c.b16 %v764, %v764
        %v797 = vpack.c.b16 %v765, %v765
        %v798 = vpack.c.b16 %v766, %v766
        %v799 = vpack.c.b16 %v767, %v767
        %v800 = vpack.c.b16 %v768, %v768
        %v801 = vpack.c.b16 %v769, %v769
        %v802 = vpack.c.b16 %v770, %v770
        %v803 = vpack.c.b16 %v771, %v771
        %v804 = vpack.c.b16 %v772, %v772
        %v805 = vpack.c.b16 %v773, %v773
        %v806 = vpack.c.b16 %v774, %v774
        %v807 = vpack.c.b16 %v775, %v775
        %v808 = vpack.c.b16 %v776, %v776
        %v809 = vpack.c.b16 %v777, %v777
        %v810 = vpack.c.b16 %v778, %v778
        %v811 = vpack.c.b16 %v779, %v779
        %v812 = vpack.c.b16 %v780, %v780
        %v813 = vpack.c.b16 %v781, %v781
        %v814 = vpack.c.b16 %v782, %v782
        %v815 = vpack.c.b16 %v783, %v783
        %v816 = vpack.c.b16 %v784, %v784
        %v817 = vpack.c.b16 %v785, %v785
        %v818 = vpack.c.b16 %v786, %v786
        %v819 = vpack.c.b16 %v787, %v787
        %v820 = vpack.c.b16 %v788, %v788
        %v821 = vpack.c.b16 %v789, %v789
        %v822 = vpack.c.b16 %v790, %v790
        %v823 = vpack.c.b16 %v791, %v791
        %v824 = vpack.c.b16 %v792, %v792
        %v825 = vpack.c.b16 %v793, %v793
        %v826 = vpack.c.b16 %v794, %v794
        %v827 = vpack.c.b16 %v795, %v795
        %860 = vst [vmem:[%s213] sm:$0xf] %v796
        %861 = vst [vmem:[%s213 + $0x4] sm:$0xf] %v797
        %862 = vst [vmem:[%s213 + $0x8] sm:$0xf] %v798
        %863 = vst [vmem:[%s213 + $0xc] sm:$0xf] %v799
        %864 = vst [vmem:[%s213 + $0x10] sm:$0xf] %v800
        %865 = vst [vmem:[%s213 + $0x14] sm:$0xf] %v801
        %866 = vst [vmem:[%s213 + $0x18] sm:$0xf] %v802
        %867 = vst [vmem:[%s213 + $0x1c] sm:$0xf] %v803
        %868 = vst [vmem:[%s213 + $0x20] sm:$0xf] %v804
        %869 = vst [vmem:[%s213 + $0x24] sm:$0xf] %v805
        %870 = vst [vmem:[%s213 + $0x28] sm:$0xf] %v806
        %871 = vst [vmem:[%s213 + $0x2c] sm:$0xf] %v807
        %872 = vst [vmem:[%s213 + $0x30] sm:$0xf] %v808
        %873 = vst [vmem:[%s213 + $0x34] sm:$0xf] %v809
        %874 = vst [vmem:[%s213 + $0x38] sm:$0xf] %v810
        %875 = vst [vmem:[%s213 + $0x3c] sm:$0xf] %v811
        %876 = vst [vmem:[%s213 + $0x40] sm:$0xf] %v812
        %877 = vst [vmem:[%s213 + $0x44] sm:$0xf] %v813
        %878 = vst [vmem:[%s213 + $0x48] sm:$0xf] %v814
        %879 = vst [vmem:[%s213 + $0x4c] sm:$0xf] %v815
        %880 = vst [vmem:[%s213 + $0x50] sm:$0xf] %v816
        %881 = vst [vmem:[%s213 + $0x54] sm:$0xf] %v817
        %882 = vst [vmem:[%s213 + $0x58] sm:$0xf] %v818
        %883 = vst [vmem:[%s213 + $0x5c] sm:$0xf] %v819
        %884 = vst [vmem:[%s213 + $0x60] sm:$0xf] %v820
        %885 = vst [vmem:[%s213 + $0x64] sm:$0xf] %v821
        %886 = vst [vmem:[%s213 + $0x68] sm:$0xf] %v822
        %887 = vst [vmem:[%s213 + $0x6c] sm:$0xf] %v823
        %888 = vst [vmem:[%s213 + $0x70] sm:$0xf] %v824
        %889 = vst [vmem:[%s213 + $0x74] sm:$0xf] %v825
        %890 = vst [vmem:[%s213 + $0x78] sm:$0xf] %v826
        %891 = vst [vmem:[%s213 + $0x7c] sm:$0xf] %v827
        %s892 = sand.u32 %s105, 1
        %s893 = scalar_lea.sflag [#allocation4], %s892
        %s894 = sand.u32 %s105, 1
        %s895 = smul.addr %s894, 128
        %s896 = scalar_lea.vmem [#allocation7], %s895
        // Predicated region
        $region37: #{tpu_custom_call.1} parent=27 // pred_check
          %p897 = pneg %p115
        $region38: #{tpu_custom_call.1} parent=27 // pred_check_branch
          %899 = sbr.rel (%p897) target = $region40
        $region39: #{tpu_custom_call.1} parent=27 // pred_region
          %s900 = smul.u32 32, %s25
          %s902 = ssub.s32 2048, 2048
          %903 = vsyncadd %s893, %s902
          %s904 = sadd.s32 %s26, %s900
          %s905 = smul.addr %s904, 64
          %s906 = scalar_lea.hbm %s2, %s905
          %s907 = sshll.u32 %s896, 4
          %s908 = int_to_ptr.vmem [resolvable:$true] %s907
          %913 = dma.vmem_to_hbm [thread:$0]  %s908, 2048, %s906, %s893, 64, 64, 4
        $region40: #{tpu_custom_call.1} parent=27 // pred_fallthru
          _
      $region28: #{tpu_custom_call.1} parent=5 // pred_fallthru
        _
      %p914 = scmp.le.s32.totalorder 2, %s15
      // Predicated region
      $region41: #{tpu_custom_call.1} parent=5 // pred_check
        %p915 = pneg %p914
      $region42: #{tpu_custom_call.1} parent=5 // pred_check_branch
        %917 = sbr.rel (%p915) target = $region44
      $region43: #{tpu_custom_call.1} parent=5 // pred_region
        %s918 = ssub.s32 %s15, 2
        // Predicated region
        $region45: #{tpu_custom_call.1} parent=43 // pred_check
          %p919 = pneg %p121
        $region46: #{tpu_custom_call.1} parent=43 // pred_check_branch
          %921 = sbr.rel (%p919) target = $region48
        $region47: #{tpu_custom_call.1} parent=43 // pred_region
          %s922 = sand.u32 %s106, 1
          %s923 = scalar_lea.sflag [#allocation4], %s922
          %s924 = sand.u32 %s106, 1
          %s925 = smul.addr %s924, 128
          %s926 = scalar_lea.vmem [#allocation7], %s925
          %927 = dma.done %s923, 2048
        $region48: #{tpu_custom_call.1} parent=43 // pred_fallthru
          _
      $region44: #{tpu_custom_call.1} parent=5 // pred_fallthru
        _
    $region6: #{tpu_custom_call.1} parent=1 // loop_footer
      %s19 = sadd.s32 1, %s15
    $region7: #{tpu_custom_call.1} parent=1 // loop_footer_branch
      %14 = sbr.rel target = $region3
    $region8: #{tpu_custom_call.1} parent=1 // loop_exit
      _
    %928 = vsyncpa [#allocation3], 1
    %s929 = scalar_lea.sflag [#allocation3], 1
    %930 = vsyncpa %s929, 1
    %931 = vsyncpa [#allocation6], 1
    %932 = vsyncpa [#allocation4], 1
    %s933 = scalar_lea.sflag [#allocation4], 1
    %934 = vsyncpa %s933, 1

</llo_original>
